<compile_context>
chip_gen: v5e
topology: v5e:2x2
jax: 0.10.0
libtpu: 0.0.40
codegen_flags: <defaults>
</compile_context>

<pallas_src>
import functools
import math

import jax
import jax.numpy as jnp
from jax.experimental import pallas as pl
from jax.experimental.pallas import tpu as pltpu


def _rvq_kernel(x_ref, emb2t_ref, emb_ref, e2_ref,                   # inputs
                qout_ref, idx_ref, dist_ref, sub_ref, loss_ref,      # outputs
                res_ref,                                             # scratch
                *, resident):
    q = pl.program_id(2)
    # resident codebooks: whole (n_q, ...) stack lives in VMEM, index by q.
    e_idx = q if resident else 0

    @pl.when(q == 0)
    def _():
        # residual starts as this (b, t) tile of x, flipped token-major (TT, D)
        res_ref[...] = jnp.transpose(x_ref[0], (1, 0))

    res = res_ref[...]                       # (TT, D) f32
    emb2t = emb2t_ref[e_idx]                 # (D, K)  = 2 * E_q^T (precomputed)
    emb = emb_ref[e_idx]                     # (K, D)  = E_q
    e2 = e2_ref[e_idx]                       # (1, K)  = ||E_q||^2 (precomputed)
    TT, D = res.shape
    K = e2.shape[-1]

    # dist = -(||r||^2 - 2 r E^T + ||e||^2) = r @ (2E)^T - ||r||^2 - ||e||^2
    x2 = jnp.sum(res * res, axis=1, keepdims=True)                    # (TT, 1)
    xe2 = jnp.dot(res, emb2t, preferred_element_type=jnp.float32)     # (TT, K)
    dist = xe2 - x2 - e2                                              # (TT, K)

    # argmax over codebook axis (first index on ties, like torch .max)
    dmax = jnp.max(dist, axis=-1, keepdims=True)                      # (TT, 1)
    iota = jax.lax.broadcasted_iota(jnp.int32, (TT, K), 1)
    idx = jnp.min(jnp.where(dist == dmax, iota, K), axis=-1, keepdims=True)

    # dequantize via one-hot matmul (MXU-friendly, exact, avoids gather)
    onehot = (iota == idx).astype(jnp.float32)                        # (TT, K)
    quant = jnp.dot(onehot, emb, preferred_element_type=jnp.float32)  # (TT, D)

    # residual update; reuse the subtraction for the commitment-loss partial
    diff = res - quant
    res_ref[...] = diff
    # per-row squared error, stored lane-major (1,1,1,TT); reduced + scaled by
    # commitment_weight / (B*T*D) in the wrapper (tile/megacore safe).
    loss_ref[...] = jnp.sum(diff * diff, axis=1)[None, None, None, :]

    dist_ref[...] = dist[None, None]                                  # (1,1,TT,K)
    idx_ref[...] = idx[:, 0][None, None, None, :]                     # (1,1,1,TT)

    # flip to channels-first (D, TT) so sub / qout are stored in final layout
    quant_t = jnp.transpose(quant, (1, 0))                            # (D, TT)
    sub_ref[...] = quant_t[None, None]                                # (1,1,D,TT)

    @pl.when(q == 0)
    def _():
        qout_ref[...] = quant_t[None]          # first quantizer: direct store

    @pl.when(q > 0)
    def _():
        qout_ref[...] = qout_ref[...] + quant_t[None]


def _vmem_budget():
    """Generation-aware (tile budget, vmem_limit, prefer_even_parallel_steps)."""
    try:
        cap = getattr(pltpu.get_tpu_info(), "vmem_capacity_bytes", None)
    except Exception:  # pragma: no cover - conservative fallback off-TPU
        cap = None
    if cap is not None and cap >= 100 * 1024 * 1024:
        # v5e / v6e: 128 MiB physical VMEM -> big tiles amortize per-step cost
        return 48 * 1024 * 1024, 80 * 1024 * 1024, False
    # v7x (64 MiB per TensorCore) or unknown: stay conservative, and prefer an
    # even number of parallel grid steps so both TCs get balanced work.
    return 20 * 1024 * 1024, 48 * 1024 * 1024, True


def _pick_time_tile(T, D, K, B, *, budget_bytes, resident_bytes,
                    prefer_even_steps):
    """Largest time-tile (128-multiple dividing T, or T itself) whose per-step
    VMEM working set fits the budget. Fails loudly instead of silently
    exceeding the budget."""

    def est(tt):
        # double-buffered I/O blocks (x, qout, sub, dist, idx, loss), f32/i32
        io = 2 * 4 * (3 * D * tt + tt * K + 2 * tt)
        if resident_bytes == 0:
            io += 2 * 4 * (2 * K * D + K)        # per-q codebook blocks
        scratch = 4 * tt * D                      # residual carry
        temps = 4 * 4 * tt * K                    # dist/iota/where/onehot temps
        return io + scratch + temps + 2 * resident_bytes

    candidates = [tt for tt in (2048, 1024, 512, 256, 128) if T % tt == 0]
    if not candidates:
        candidates = [T]                          # small / non-128-divisible T
    for tt in candidates:
        if est(tt) <= budget_bytes:
            if (prefer_even_steps and B % 2 == 1 and (T // tt) % 2 == 1
                    and B * (T // tt) > 1):
                for tt2 in candidates:
                    if tt2 < tt and (T // tt2) % 2 == 0 and est(tt2) <= budget_bytes:
                        return tt2
            return tt
    raise ValueError(
        f"No time tile fits the VMEM budget ({budget_bytes} bytes) for "
        f"T={T}, K={K}, D={D}; consider tiling the codebook (K) axis.")


def rvq_forward(x_bdt, embed, *, commitment_weight=0.2):
    """Forward of DistributedResidualVectorQuantizationM.

    x_bdt: (B, D, T) float32 -- same layout as the PyTorch module input.
    embed: (n_q, K, D) float32 codebooks.

    Returns (quantized_out, out_indices, out_losses, out_sub_quants, out_dists)
    with shapes ((B,D,T), (n_q,B,T) int32, (n_q,1), (n_q,B,D,T), (n_q,B,T,K)).
    """
    B, D, T = x_bdt.shape
    n_q, K, Dc = embed.shape
    assert Dc == D

    x_bdt = x_bdt.astype(jnp.float32)
    embed = embed.astype(jnp.float32)

    # Hoisted per-codebook constants (review item 1 & 2):
    emb2t = jnp.swapaxes(embed, 1, 2) * 2.0            # (n_q, D, K): 2*E^T
    e2 = jnp.sum(embed * embed, axis=2)[:, None, :]    # (n_q, 1, K): ||E||^2

    codebook_bytes = 4 * (2 * n_q * K * D + n_q * K)
    resident = codebook_bytes <= 8 * 1024 * 1024       # VMEM-resident codebooks

    budget, vmem_limit, prefer_even = _vmem_budget()
    TT = _pick_time_tile(T, D, K, B, budget_bytes=budget,
                         resident_bytes=codebook_bytes if resident else 0,
                         prefer_even_steps=prefer_even)
    assert T % TT == 0
    n_t = T // TT

    out_shapes = (
        jax.ShapeDtypeStruct((B, D, T), jnp.float32),        # quantized_out
        jax.ShapeDtypeStruct((n_q, B, 1, T), jnp.int32),     # indices (lane-major)
        jax.ShapeDtypeStruct((n_q, B, T, K), jnp.float32),   # dists (lane-dense)
        jax.ShapeDtypeStruct((n_q, B, D, T), jnp.float32),   # sub-quants
        jax.ShapeDtypeStruct((n_q, B, 1, T), jnp.float32),   # commit-loss rows
    )

    if resident:
        emb2t_spec = pl.BlockSpec((n_q, D, K), lambda b, t, q: (0, 0, 0))
        emb_spec = pl.BlockSpec((n_q, K, D), lambda b, t, q: (0, 0, 0))
        e2_spec = pl.BlockSpec((n_q, 1, K), lambda b, t, q: (0, 0, 0))
    else:
        emb2t_spec = pl.BlockSpec((1, D, K), lambda b, t, q: (q, 0, 0))
        emb_spec = pl.BlockSpec((1, K, D), lambda b, t, q: (q, 0, 0))
        e2_spec = pl.BlockSpec((1, 1, K), lambda b, t, q: (q, 0, 0))

    grid_spec = pltpu.PrefetchScalarGridSpec(
        num_scalar_prefetch=0,
        grid=(B, n_t, n_q),                                  # q innermost: residual carry
        in_specs=[
            pl.BlockSpec((1, D, TT), lambda b, t, q: (b, 0, t)),        # x tile
            emb2t_spec, emb_spec, e2_spec,
        ],
        out_specs=[
            pl.BlockSpec((1, D, TT), lambda b, t, q: (b, 0, t)),        # accumulator
            pl.BlockSpec((1, 1, 1, TT), lambda b, t, q: (q, b, 0, t)),  # idx
            pl.BlockSpec((1, 1, TT, K), lambda b, t, q: (q, b, t, 0)),  # dist
            pl.BlockSpec((1, 1, D, TT), lambda b, t, q: (q, b, 0, t)),  # sub-quant
            pl.BlockSpec((1, 1, 1, TT), lambda b, t, q: (q, b, 0, t)),  # loss rows
        ],
        scratch_shapes=[pltpu.VMEM((TT, D), jnp.float32)],              # residual carry
    )

    qout, idx, dists, subq, losspp = pl.pallas_call(
        functools.partial(_rvq_kernel, resident=resident),
        out_shape=out_shapes,
        grid_spec=grid_spec,
        compiler_params=pltpu.CompilerParams(
            dimension_semantics=("parallel", "parallel", "arbitrary"),
            vmem_limit_bytes=vmem_limit),
    )(x_bdt, emb2t, embed, e2)

    out_indices = idx[:, :, 0, :]                                       # (n_q, B, T)
    # global mean over all B*T*D elements (correct under tiling / megacore)
    out_losses = (commitment_weight *
                  jnp.sum(losspp, axis=(1, 2, 3)) / (B * T * D))[:, None]  # (n_q, 1)
    return qout, out_indices, out_losses, subq, dists


def init_codebooks(key, num_quantizers, codebook_size, dim):
    """Deterministic stand-in for uniform_init (nn.init.kaiming_uniform_) on a
    (n_q, K, D) buffer: U(-b, b) with b = sqrt(6 / fan_in), fan_in = K*D."""
    fan_in = codebook_size * dim
    bound = math.sqrt(6.0 / fan_in)
    return jax.random.uniform(key, (num_quantizers, codebook_size, dim),
                              dtype=jnp.float32, minval=-bound, maxval=bound)


def _rvq_reference(x_bdt, embed, commitment_weight=0.2):
    """Pure-JAX reference mirroring the PyTorch forward (value-level)."""
    n_q = embed.shape[0]
    res = jnp.transpose(x_bdt, (0, 2, 1)).astype(jnp.float32)   # (B, T, D)
    qout = jnp.zeros_like(res)
    idxs, dists, subs, losses = [], [], [], []
    for q in range(n_q):
        e = embed[q].astype(jnp.float32)
        d = -(jnp.sum(res * res, -1, keepdims=True) - 2.0 * (res @ e.T)
              + jnp.sum(e * e, -1)[None, None, :])
        i = jnp.argmax(d, axis=-1)
        quant = e[i]
        losses.append(commitment_weight * jnp.mean((quant - res) ** 2))
        res = res - quant
        qout = qout + quant
        idxs.append(i.astype(jnp.int32))
        dists.append(d)
        subs.append(jnp.transpose(quant, (0, 2, 1)))
    return (jnp.transpose(qout, (0, 2, 1)), jnp.stack(idxs),
            jnp.stack(losses)[:, None], jnp.stack(subs), jnp.stack(dists))


if __name__ == "__main__":
    # small shapes consistent with the module: x is (batch, dim, time)
    B, DIM, T = 2, 32, 8
    NUM_Q, CODEBOOK_SIZE = 4, 128

    key = jax.random.PRNGKey(0)
    k_x, k_e = jax.random.split(key)
    x = jax.random.normal(k_x, (B, DIM, T), dtype=jnp.float32)
    embed = init_codebooks(k_e, NUM_Q, CODEBOOK_SIZE, DIM)

    outs = rvq_forward(x, embed, commitment_weight=0.2)
    outs = jax.block_until_ready(outs)
    quantized_out, out_indices, out_losses, out_sub_quants, out_dists = outs

    assert quantized_out.shape == (B, DIM, T)
    assert out_indices.shape == (NUM_Q, B, T) and out_indices.dtype == jnp.int32
    assert out_losses.shape == (NUM_Q, 1)
    assert out_sub_quants.shape == (NUM_Q, B, DIM, T)
    assert out_dists.shape == (NUM_Q, B, T, CODEBOOK_SIZE)
    # residual-VQ consistency: sum of sub-quants == quantized_out
    assert jnp.allclose(out_sub_quants.sum(0), quantized_out, atol=1e-5)

    # pure-JAX reference check (ulp-level fp association differences on dist)
    r_qout, r_idx, r_loss, r_sub, r_dist = _rvq_reference(x, embed, 0.2)
    assert jnp.array_equal(out_indices, r_idx)
    assert jnp.allclose(quantized_out, r_qout, atol=1e-5)
    assert jnp.allclose(out_sub_quants, r_sub, atol=1e-5)
    assert jnp.allclose(out_losses, r_loss, atol=1e-5)
    assert jnp.allclose(out_dists, r_dist, atol=1e-3, rtol=1e-4)

    print("KERNEL_OK")
</pallas_src>

<mosaic_0001>
module attributes {stable_mosaic.version = 11 : i64} {
  func.func @_rvq_kernel(%arg0: i32, %arg1: i32, %arg2: i32, %arg3: memref<1x32x8xf32, #tpu.memory_space<vmem>>, %arg4: memref<4x32x128xf32, #tpu.memory_space<vmem>>, %arg5: memref<4x128x32xf32, #tpu.memory_space<vmem>>, %arg6: memref<4x1x128xf32, #tpu.memory_space<vmem>>, %arg7: memref<1x32x8xf32, #tpu.memory_space<vmem>>, %arg8: memref<1x1x1x8xi32, #tpu.memory_space<vmem>>, %arg9: memref<1x1x8x128xf32, #tpu.memory_space<vmem>>, %arg10: memref<1x1x32x8xf32, #tpu.memory_space<vmem>>, %arg11: memref<1x1x1x8xf32, #tpu.memory_space<vmem>>, %arg12: memref<8x32xf32, #tpu.memory_space<vmem>>) attributes {dimension_semantics = [#tpu.dimension_semantics<parallel>, #tpu.dimension_semantics<parallel>, #tpu.dimension_semantics<arbitrary>], iteration_bounds = array<i64: 2, 1, 4>, scalar_prefetch = 0 : i64, scratch_operands = 1 : i64, tpu.core_type = #tpu.core_type<tc>, window_params = [{transform_indices = @transform_0, window_bounds = array<i64: 1, 32, 8>}, {pipeline_mode = #tpu.pipeline_mode<synchronous>, transform_indices = @transform_1, window_bounds = array<i64: 4, 32, 128>}, {pipeline_mode = #tpu.pipeline_mode<synchronous>, transform_indices = @transform_2, window_bounds = array<i64: 4, 128, 32>}, {pipeline_mode = #tpu.pipeline_mode<synchronous>, transform_indices = @transform_3, window_bounds = array<i64: 4, 1, 128>}, {transform_indices = @transform_4, window_bounds = array<i64: 1, 32, 8>}, {transform_indices = @transform_5, window_bounds = array<i64: 1, 1, 1, 8>}, {transform_indices = @transform_6, window_bounds = array<i64: 1, 1, 8, 128>}, {transform_indices = @transform_7, window_bounds = array<i64: 1, 1, 32, 8>}, {transform_indices = @transform_8, window_bounds = array<i64: 1, 1, 1, 8>}]} {
    %c0_i32 = arith.constant 0 : i32
    %0 = arith.cmpi eq, %arg2, %c0_i32 : i32
    %1 = arith.extui %0 : i1 to i32
    %c0_i32_0 = arith.constant 0 : i32
    %2 = arith.cmpi ne, %1, %c0_i32_0 : i32
    scf.if %2 {
      %c0_35 = arith.constant 0 : index
      %c0_36 = arith.constant 0 : index
      %c0_37 = arith.constant 0 : index
      %55 = vector.load %arg3[%c0_35, %c0_36, %c0_37] : memref<1x32x8xf32, #tpu.memory_space<vmem>>, vector<1x32x8xf32>
      %56 = vector.shape_cast %55 : vector<1x32x8xf32> to vector<32x8xf32>
      %57 = tpu.transpose %56, [1, 0] : vector<32x8xf32> -> vector<8x32xf32>
      %c0_38 = arith.constant 0 : index
      %c0_39 = arith.constant 0 : index
      %58 = vector.load %arg12[%c0_38, %c0_39] : memref<8x32xf32, #tpu.memory_space<vmem>>, vector<8x32xf32>
      tpu.vector_store %arg12[%c0_38, %c0_39], %57 {strides = array<i32>} : memref<8x32xf32, #tpu.memory_space<vmem>>, vector<8x32xf32>,
    } else {
    }
    %c0 = arith.constant 0 : index
    %c0_1 = arith.constant 0 : index
    %3 = vector.load %arg12[%c0, %c0_1] : memref<8x32xf32, #tpu.memory_space<vmem>>, vector<8x32xf32>
    %4 = arith.index_cast %arg2 : i32 to index
    %c0_2 = arith.constant 0 : index
    %c0_3 = arith.constant 0 : index
    %5 = vector.load %arg4[%4, %c0_2, %c0_3] : memref<4x32x128xf32, #tpu.memory_space<vmem>>, vector<1x32x128xf32>
    %6 = vector.shape_cast %5 : vector<1x32x128xf32> to vector<32x128xf32>
    %7 = arith.index_cast %arg2 : i32 to index
    %c0_4 = arith.constant 0 : index
    %c0_5 = arith.constant 0 : index
    %8 = vector.load %arg5[%7, %c0_4, %c0_5] : memref<4x128x32xf32, #tpu.memory_space<vmem>>, vector<1x128x32xf32>
    %9 = vector.shape_cast %8 : vector<1x128x32xf32> to vector<128x32xf32>
    %10 = arith.index_cast %arg2 : i32 to index
    %c0_6 = arith.constant 0 : index
    %c0_7 = arith.constant 0 : index
    %11 = vector.load %arg6[%10, %c0_6, %c0_7] : memref<4x1x128xf32, #tpu.memory_space<vmem>>, vector<1x1x128xf32>
    %12 = vector.shape_cast %11 : vector<1x1x128xf32> to vector<1x128xf32>
    %13 = arith.mulf %3, %3 : vector<8x32xf32>
    %cst = arith.constant dense<0.000000e+00> : vector<8xf32>
    %14 = vector.multi_reduction <add>, %13, %cst [1] : vector<8x32xf32> to vector<8xf32>
    %15 = vector.shape_cast %14 : vector<8xf32> to vector<8x1xf32>
    %cst_8 = arith.constant dense<0.000000e+00> : vector<8x128xf32>
    %16 = tpu.matmul %3, %6, %cst_8 {dimension_numbers = #tpu.dot_dimension_numbers<[1], [0], [0], [1], [0, 0, 1, 1], [], []>} : vector<8x32xf32>, vector<32x128xf32>, vector<8x128xf32> -> vector<8x128xf32>
    %17 = vector.broadcast %15 : vector<8x1xf32> to vector<8x128xf32>
    %18 = arith.subf %16, %17 : vector<8x128xf32>
    %19 = vector.broadcast %12 : vector<1x128xf32> to vector<8x128xf32>
    %20 = arith.subf %18, %19 : vector<8x128xf32>
    %cst_9 = arith.constant dense<0xFF800000> : vector<8xf32>
    %21 = vector.multi_reduction <maximumf>, %20, %cst_9 [1] : vector<8x128xf32> to vector<8xf32>
    %22 = vector.shape_cast %21 : vector<8xf32> to vector<8x1xf32>
    %23 = tpu.iota {dimensions = array<i32: 1>} : vector<8x128xi32>
    %24 = vector.broadcast %22 : vector<8x1xf32> to vector<8x128xf32>
    %25 = arith.cmpf oeq, %20, %24 : vector<8x128xf32>
    %c128_i32 = arith.constant 128 : i32
    %26 = vector.broadcast %c128_i32 : i32 to vector<8x128xi32>
    %27 = arith.select %25, %23, %26 : vector<8x128xi1>, vector<8x128xi32>
    %cst_10 = arith.constant dense<2147483647> : vector<8xi32>
    %28 = vector.multi_reduction <minsi>, %27, %cst_10 [1] : vector<8x128xi32> to vector<8xi32>
    %29 = vector.shape_cast %28 : vector<8xi32> to vector<8x1xi32>
    %30 = vector.broadcast %29 : vector<8x1xi32> to vector<8x128xi32>
    %31 = arith.cmpi eq, %23, %30 : vector<8x128xi32>
    %32 = arith.extui %31 : vector<8x128xi1> to vector<8x128xi32>
    %33 = arith.sitofp %32 : vector<8x128xi32> to vector<8x128xf32>
    %cst_11 = arith.constant dense<0.000000e+00> : vector<8x32xf32>
    %34 = tpu.matmul %33, %9, %cst_11 {dimension_numbers = #tpu.dot_dimension_numbers<[1], [0], [0], [1], [0, 0, 1, 1], [], []>} : vector<8x128xf32>, vector<128x32xf32>, vector<8x32xf32> -> vector<8x32xf32>
    %35 = arith.subf %3, %34 : vector<8x32xf32>
    %c0_12 = arith.constant 0 : index
    %c0_13 = arith.constant 0 : index
    %36 = vector.load %arg12[%c0_12, %c0_13] : memref<8x32xf32, #tpu.memory_space<vmem>>, vector<8x32xf32>
    tpu.vector_store %arg12[%c0_12, %c0_13], %35 {strides = array<i32>} : memref<8x32xf32, #tpu.memory_space<vmem>>, vector<8x32xf32>,
    %37 = arith.mulf %35, %35 : vector<8x32xf32>
    %cst_14 = arith.constant dense<0.000000e+00> : vector<8xf32>
    %38 = vector.multi_reduction <add>, %37, %cst_14 [1] : vector<8x32xf32> to vector<8xf32>
    %39 = vector.shape_cast %38 : vector<8xf32> to vector<1x1x1x8xf32>
    %c0_15 = arith.constant 0 : index
    %c0_16 = arith.constant 0 : index
    %c0_17 = arith.constant 0 : index
    %c0_18 = arith.constant 0 : index
    %40 = vector.load %arg11[%c0_15, %c0_16, %c0_17, %c0_18] : memref<1x1x1x8xf32, #tpu.memory_space<vmem>>, vector<1x1x1x8xf32>
    tpu.vector_store %arg11[%c0_15, %c0_16, %c0_17, %c0_18], %39 {strides = array<i32>} : memref<1x1x1x8xf32, #tpu.memory_space<vmem>>, vector<1x1x1x8xf32>,
    %41 = vector.shape_cast %20 : vector<8x128xf32> to vector<1x1x8x128xf32>
    %c0_19 = arith.constant 0 : index
    %c0_20 = arith.constant 0 : index
    %c0_21 = arith.constant 0 : index
    %c0_22 = arith.constant 0 : index
    %42 = vector.load %arg9[%c0_19, %c0_20, %c0_21, %c0_22] : memref<1x1x8x128xf32, #tpu.memory_space<vmem>>, vector<1x1x8x128xf32>
    tpu.vector_store %arg9[%c0_19, %c0_20, %c0_21, %c0_22], %41 {strides = array<i32>} : memref<1x1x8x128xf32, #tpu.memory_space<vmem>>, vector<1x1x8x128xf32>,
    %43 = vector.shape_cast %29 : vector<8x1xi32> to vector<8xi32>
    %44 = vector.shape_cast %43 : vector<8xi32> to vector<1x1x1x8xi32>
    %c0_23 = arith.constant 0 : index
    %c0_24 = arith.constant 0 : index
    %c0_25 = arith.constant 0 : index
    %c0_26 = arith.constant 0 : index
    %45 = vector.load %arg8[%c0_23, %c0_24, %c0_25, %c0_26] : memref<1x1x1x8xi32, #tpu.memory_space<vmem>>, vector<1x1x1x8xi32>
    tpu.vector_store %arg8[%c0_23, %c0_24, %c0_25, %c0_26], %44 {strides = array<i32>} : memref<1x1x1x8xi32, #tpu.memory_space<vmem>>, vector<1x1x1x8xi32>,
    %46 = tpu.transpose %34, [1, 0] : vector<8x32xf32> -> vector<32x8xf32>
    %47 = vector.shape_cast %46 : vector<32x8xf32> to vector<1x1x32x8xf32>
    %c0_27 = arith.constant 0 : index
    %c0_28 = arith.constant 0 : index
    %c0_29 = arith.constant 0 : index
    %c0_30 = arith.constant 0 : index
    %48 = vector.load %arg10[%c0_27, %c0_28, %c0_29, %c0_30] : memref<1x1x32x8xf32, #tpu.memory_space<vmem>>, vector<1x1x32x8xf32>
    tpu.vector_store %arg10[%c0_27, %c0_28, %c0_29, %c0_30], %47 {strides = array<i32>} : memref<1x1x32x8xf32, #tpu.memory_space<vmem>>, vector<1x1x32x8xf32>,
    %c0_i32_31 = arith.constant 0 : i32
    %49 = arith.cmpi eq, %arg2, %c0_i32_31 : i32
    %50 = arith.extui %49 : i1 to i32
    %c0_i32_32 = arith.constant 0 : i32
    %51 = arith.cmpi ne, %50, %c0_i32_32 : i32
    scf.if %51 {
      %55 = vector.shape_cast %46 : vector<32x8xf32> to vector<1x32x8xf32>
      %c0_35 = arith.constant 0 : index
      %c0_36 = arith.constant 0 : index
      %c0_37 = arith.constant 0 : index
      %56 = vector.load %arg7[%c0_35, %c0_36, %c0_37] : memref<1x32x8xf32, #tpu.memory_space<vmem>>, vector<1x32x8xf32>
      tpu.vector_store %arg7[%c0_35, %c0_36, %c0_37], %55 {strides = array<i32>} : memref<1x32x8xf32, #tpu.memory_space<vmem>>, vector<1x32x8xf32>,
    } else {
    }
    %c0_i32_33 = arith.constant 0 : i32
    %52 = arith.cmpi sgt, %arg2, %c0_i32_33 : i32
    %53 = arith.extui %52 : i1 to i32
    %c0_i32_34 = arith.constant 0 : i32
    %54 = arith.cmpi ne, %53, %c0_i32_34 : i32
    scf.if %54 {
      %c0_35 = arith.constant 0 : index
      %c0_36 = arith.constant 0 : index
      %c0_37 = arith.constant 0 : index
      %55 = vector.load %arg7[%c0_35, %c0_36, %c0_37] : memref<1x32x8xf32, #tpu.memory_space<vmem>>, vector<1x32x8xf32>
      %56 = vector.shape_cast %46 : vector<32x8xf32> to vector<1x32x8xf32>
      %57 = arith.addf %55, %56 : vector<1x32x8xf32>
      %c0_38 = arith.constant 0 : index
      %c0_39 = arith.constant 0 : index
      %c0_40 = arith.constant 0 : index
      %58 = vector.load %arg7[%c0_38, %c0_39, %c0_40] : memref<1x32x8xf32, #tpu.memory_space<vmem>>, vector<1x32x8xf32>
      tpu.vector_store %arg7[%c0_38, %c0_39, %c0_40], %57 {strides = array<i32>} : memref<1x32x8xf32, #tpu.memory_space<vmem>>, vector<1x32x8xf32>,
    } else {
    }
    return
  }
  func.func @transform_0(%arg0: i32, %arg1: i32, %arg2: i32) -> (i32, i32, i32) {
    %c0_i32 = arith.constant 0 : i32
    %c0_i32_0 = arith.constant 0 : i32
    return %arg0, %c0_i32, %arg1 : i32, i32, i32
  }
  func.func @transform_1(%arg0: i32, %arg1: i32, %arg2: i32) -> (i32, i32, i32) {
    %c0_i32 = arith.constant 0 : i32
    %c0_i32_0 = arith.constant 0 : i32
    %c0_i32_1 = arith.constant 0 : i32
    %c0_i32_2 = arith.constant 0 : i32
    return %c0_i32, %c0_i32_0, %c0_i32_1 : i32, i32, i32
  }
  func.func @transform_2(%arg0: i32, %arg1: i32, %arg2: i32) -> (i32, i32, i32) {
    %c0_i32 = arith.constant 0 : i32
    %c0_i32_0 = arith.constant 0 : i32
    %c0_i32_1 = arith.constant 0 : i32
    %c0_i32_2 = arith.constant 0 : i32
    return %c0_i32, %c0_i32_0, %c0_i32_1 : i32, i32, i32
  }
  func.func @transform_3(%arg0: i32, %arg1: i32, %arg2: i32) -> (i32, i32, i32) {
    %c0_i32 = arith.constant 0 : i32
    %c0_i32_0 = arith.constant 0 : i32
    %c0_i32_1 = arith.constant 0 : i32
    %c0_i32_2 = arith.constant 0 : i32
    return %c0_i32, %c0_i32_0, %c0_i32_1 : i32, i32, i32
  }
  func.func @transform_4(%arg0: i32, %arg1: i32, %arg2: i32) -> (i32, i32, i32) {
    %c0_i32 = arith.constant 0 : i32
    %c0_i32_0 = arith.constant 0 : i32
    return %arg0, %c0_i32, %arg1 : i32, i32, i32
  }
  func.func @transform_5(%arg0: i32, %arg1: i32, %arg2: i32) -> (i32, i32, i32, i32) {
    %c0_i32 = arith.constant 0 : i32
    %c0_i32_0 = arith.constant 0 : i32
    return %arg2, %arg0, %c0_i32, %arg1 : i32, i32, i32, i32
  }
  func.func @transform_6(%arg0: i32, %arg1: i32, %arg2: i32) -> (i32, i32, i32, i32) {
    %c0_i32 = arith.constant 0 : i32
    %c0_i32_0 = arith.constant 0 : i32
    return %arg2, %arg0, %arg1, %c0_i32 : i32, i32, i32, i32
  }
  func.func @transform_7(%arg0: i32, %arg1: i32, %arg2: i32) -> (i32, i32, i32, i32) {
    %c0_i32 = arith.constant 0 : i32
    %c0_i32_0 = arith.constant 0 : i32
    return %arg2, %arg0, %c0_i32, %arg1 : i32, i32, i32, i32
  }
  func.func @transform_8(%arg0: i32, %arg1: i32, %arg2: i32) -> (i32, i32, i32, i32) {
    %c0_i32 = arith.constant 0 : i32
    %c0_i32_0 = arith.constant 0 : i32
    return %arg2, %arg0, %c0_i32, %arg1 : i32, i32, i32, i32
  }
}

</mosaic_0001>

<llo_original>
// kernel: tpu_custom_call.1
$region0: #{tpu_custom_call.1}
  #allocation0 [shape = 'u32[]', space=smem, size = 0x4, offset = 0x4, fixed_abs, tag = 'smem constant byte address 0x4 - core index']
  #allocation1 [shape = 'u32[72,128]{1,0:T(1,128)}', space=vmem, size = 0x9000, scoped, tag = 'internal scratch']
  #allocation2 [shape = 'f32[8,32]{1,0:T(8,128)}', space=vmem, size = 0x1000, scoped, tag = 'scratch operand']
  %s0 = inlined_call_operand.vmem [shape: f32[2,32,8], index: 0, kind: input, shape index: {}]
  %s1 = inlined_call_operand.vmem [shape: f32[4,32,128], index: 1, kind: input, shape index: {}]
  %s2 = inlined_call_operand.vmem [shape: f32[4,128,32], index: 2, kind: input, shape index: {}]
  %s3 = inlined_call_operand.vmem [shape: f32[4,1,128], index: 3, kind: input, shape index: {}]
  %s4 = inlined_call_operand.vmem [shape: f32[2,32,8], index: 4, kind: output, shape index: {0}]
  %s5 = inlined_call_operand.hbm [shape: s32[4,2,1,8], index: 5, kind: output, shape index: {1}]
  %s6 = inlined_call_operand.hbm [shape: f32[4,2,8,128], index: 6, kind: output, shape index: {2}]
  %s7 = inlined_call_operand.vmem [shape: f32[4,2,32,8], index: 7, kind: output, shape index: {3}]
  %s8 = inlined_call_operand.hbm [shape: f32[4,2,1,8], index: 8, kind: output, shape index: {4}]
  %9 = xla_tuple %s4, %s5, %s6, %s7, %s8
  %s10 = sld [smem:[#allocation0]]
  $region93: #{tpu_custom_call.1} parent=0
    _
  %s12 = ssub.s32 1, %s10
  %s13 = scalar_select 0, %s12, %s10
  $region1: #{tpu_custom_call.1} parent=0
    #allocation3 [shape = 'u8[1024]{0}', space=vmem, size = 0x400, scoped, tag = 'output window, operand 1']
    #allocation4 [shape = 's32[2]{0}', space=sflag, size = 0x8, scoped, tag = 'scoped memory for tpu_custom_call.1']
    #allocation5 [shape = 'u8[8192]{0}', space=vmem, size = 0x2000, scoped, tag = 'output window, operand 2']
    #allocation6 [shape = 's32[2]{0}', space=sflag, size = 0x8, scoped, tag = 'scoped memory for tpu_custom_call.1']
    #allocation7 [shape = 'u8[1024]{0}', space=vmem, size = 0x400, scoped, tag = 'output window, operand 4']
    %14 = vsyncpa [#allocation4], 0
    %s15 = scalar_lea.sflag [#allocation4], 1
    %16 = vsyncpa %s15, 0
    %17 = vsyncpa [#allocation6], 0
    %s18 = scalar_lea.sflag [#allocation6], 1
    %19 = vsyncpa %s18, 0
    loop: start=0, step=1, limit=10
    $region2: #{tpu_custom_call.1} parent=1 // loop_pre_header
      _
    $region3: #{tpu_custom_call.1} parent=1 // loop_header
      %s21 = sphi 0, %s25
      %p22 = scmp.ge.s32.totalorder %s21, 10
      %s28 = sphi 0, %s47
      %s29 = sphi 0, %s43
      %s30 = sphi 0, %s39
      %s31 = sphi 0, %s28
      %s32 = sphi 0, %s29
      %s33 = sphi 0, %s30
      %s34 = sphi 0, %s31
      %s35 = sphi 0, %s32
      %s36 = sphi 0, %s33
      %s52 = sphi 0, %s54
      %s55 = sphi 0, %s52
      %s56 = sphi 0, %s55
      %s72 = sphi 0, %s56
      %s76 = sphi 0, %s76
      %s78 = sphi 0, %s76
      %s79 = sphi 0, %s78
      %s93 = sphi 0, %s79
      %s97 = sphi 0, %s97
      %s99 = sphi 0, %s97
      %s100 = sphi 0, %s99
      %s114 = sphi 0, %s100
      %s118 = sphi 0, %s118
      %s120 = sphi 0, %s118
      %s121 = sphi 0, %s120
      %s135 = sphi 0, %s121
      %s143 = sphi 0, %s145
      %s146 = sphi 0, %s143
      %s147 = sphi 0, %s146
      %s163 = sphi 0, %s147
      %s173 = sphi 0, %s175
      %s176 = sphi 0, %s173
      %s177 = sphi 0, %s176
      %s193 = sphi 0, %s177
      %s203 = sphi 0, %s205
      %s206 = sphi 0, %s203
      %s207 = sphi 0, %s206
      %s223 = sphi 0, %s207
      %s233 = sphi 0, %s235
      %s236 = sphi 0, %s233
      %s237 = sphi 0, %s236
      %s253 = sphi 0, %s237
      %s263 = sphi 0, %s265
      %s266 = sphi 0, %s263
      %s267 = sphi 0, %s266
      %s283 = sphi 0, %s267
    $region4: #{tpu_custom_call.1} parent=1 // loop_header_branch
      %24 = sbr.rel (%p22) target = $region8
    $region5: #{tpu_custom_call.1} parent=1 // loop_body
      %s26 = ssub.s32 %s21, 1
      %s27 = ssub.s32 %s21, 2
      %s37 = sadd.s32 1, %s30
      %p38 = scmp.ge.s32.totalorder %s37, 4
      %s39 = scalar_select %p38, 0, %s37
      %s40 = sadd.s32 1, %s29
      %s41 = scalar_select %p38, %s40, %s29
      %p42 = scmp.ge.s32.totalorder %s41, 1
      %s43 = scalar_select %p42, 0, %s41
      %s44 = sadd.s32 1, %s28
      %s45 = scalar_select %p42, %s44, %s28
      %p46 = scmp.ge.s32.totalorder %s45, 2
      %s47 = scalar_select %p46, 0, %s45
      %s48 = ssub.s32 %s28, %s47
      %s49 = ssub.s32 %s29, %s43
      %s50 = sor.u32 %s48, %s49
      %p51 = scmp.eq.s32.totalorder %s50, 0
      %s53 = sadd.s32 %s52, 1
      %s54 = scalar_select %p51, %s52, %s53
      %p57 = pneg %p51
      %p58 = scmp.eq.s32.totalorder %s21, 7
      %p59 = por %p57, %p58
      %p60 = scmp.ne.s32.totalorder %s52, %s55
      %p61 = scmp.eq.s32.totalorder %s21, 0
      %p62 = por %p60, %p61
      %p63 = scmp.ne.s32.totalorder %s52, %s55
      %p64 = scmp.eq.s32.totalorder %s26, 7
      %p65 = por %p63, %p64
      %p66 = scmp.ne.s32.totalorder %s55, %s56
      %p67 = scmp.eq.s32.totalorder %s26, 0
      %p68 = por %p66, %p67
      %p69 = scmp.ne.s32.totalorder %s55, %s56
      %p70 = scmp.eq.s32.totalorder %s27, 7
      %p71 = por %p69, %p70
      %p73 = scmp.ne.s32.totalorder %s56, %s72
      %p74 = scmp.eq.s32.totalorder %s27, 0
      %p75 = por %p73, %p74
      %s77 = sadd.s32 %s76, 1
      %p80 = scmp.eq.s32.totalorder %s21, 7
      %p81 = scmp.ne.s32.totalorder %s76, %s78
      %p82 = scmp.eq.s32.totalorder %s21, 0
      %p83 = por %p81, %p82
      %p84 = scmp.ne.s32.totalorder %s76, %s78
      %p85 = scmp.eq.s32.totalorder %s26, 7
      %p86 = por %p84, %p85
      %p87 = scmp.ne.s32.totalorder %s78, %s79
      %p88 = scmp.eq.s32.totalorder %s26, 0
      %p89 = por %p87, %p88
      %p90 = scmp.ne.s32.totalorder %s78, %s79
      %p91 = scmp.eq.s32.totalorder %s27, 7
      %p92 = por %p90, %p91
      %p94 = scmp.ne.s32.totalorder %s79, %s93
      %p95 = scmp.eq.s32.totalorder %s27, 0
      %p96 = por %p94, %p95
      %s98 = sadd.s32 %s97, 1
      %p101 = scmp.eq.s32.totalorder %s21, 7
      %p102 = scmp.ne.s32.totalorder %s97, %s99
      %p103 = scmp.eq.s32.totalorder %s21, 0
      %p104 = por %p102, %p103
      %p105 = scmp.ne.s32.totalorder %s97, %s99
      %p106 = scmp.eq.s32.totalorder %s26, 7
      %p107 = por %p105, %p106
      %p108 = scmp.ne.s32.totalorder %s99, %s100
      %p109 = scmp.eq.s32.totalorder %s26, 0
      %p110 = por %p108, %p109
      %p111 = scmp.ne.s32.totalorder %s99, %s100
      %p112 = scmp.eq.s32.totalorder %s27, 7
      %p113 = por %p111, %p112
      %p115 = scmp.ne.s32.totalorder %s100, %s114
      %p116 = scmp.eq.s32.totalorder %s27, 0
      %p117 = por %p115, %p116
      %s119 = sadd.s32 %s118, 1
      %p122 = scmp.eq.s32.totalorder %s21, 7
      %p123 = scmp.ne.s32.totalorder %s118, %s120
      %p124 = scmp.eq.s32.totalorder %s21, 0
      %p125 = por %p123, %p124
      %p126 = scmp.ne.s32.totalorder %s118, %s120
      %p127 = scmp.eq.s32.totalorder %s26, 7
      %p128 = por %p126, %p127
      %p129 = scmp.ne.s32.totalorder %s120, %s121
      %p130 = scmp.eq.s32.totalorder %s26, 0
      %p131 = por %p129, %p130
      %p132 = scmp.ne.s32.totalorder %s120, %s121
      %p133 = scmp.eq.s32.totalorder %s27, 7
      %p134 = por %p132, %p133
      %p136 = scmp.ne.s32.totalorder %s121, %s135
      %p137 = scmp.eq.s32.totalorder %s27, 0
      %p138 = por %p136, %p137
      %s139 = ssub.s32 %s28, %s47
      %s140 = ssub.s32 %s29, %s43
      %s141 = sor.u32 %s139, %s140
      %p142 = scmp.eq.s32.totalorder %s141, 0
      %s144 = sadd.s32 %s143, 1
      %s145 = scalar_select %p142, %s143, %s144
      %p148 = pneg %p142
      %p149 = scmp.eq.s32.totalorder %s21, 7
      %p150 = por %p148, %p149
      %p151 = scmp.ne.s32.totalorder %s143, %s146
      %p152 = scmp.eq.s32.totalorder %s21, 0
      %p153 = por %p151, %p152
      %p154 = scmp.ne.s32.totalorder %s143, %s146
      %p155 = scmp.eq.s32.totalorder %s26, 7
      %p156 = por %p154, %p155
      %p157 = scmp.ne.s32.totalorder %s146, %s147
      %p158 = scmp.eq.s32.totalorder %s26, 0
      %p159 = por %p157, %p158
      %p160 = scmp.ne.s32.totalorder %s146, %s147
      %p161 = scmp.eq.s32.totalorder %s27, 7
      %p162 = por %p160, %p161
      %p164 = scmp.ne.s32.totalorder %s147, %s163
      %p165 = scmp.eq.s32.totalorder %s27, 0
      %p166 = por %p164, %p165
      %s167 = ssub.s32 %s30, %s39
      %s168 = ssub.s32 %s28, %s47
      %s169 = sor.u32 %s167, %s168
      %s170 = ssub.s32 %s29, %s43
      %s171 = sor.u32 %s169, %s170
      %p172 = scmp.eq.s32.totalorder %s171, 0
      %s174 = sadd.s32 %s173, 1
      %s175 = scalar_select %p172, %s173, %s174
      %p178 = pneg %p172
      %p179 = scmp.eq.s32.totalorder %s21, 7
      %p180 = por %p178, %p179
      %p181 = scmp.ne.s32.totalorder %s173, %s176
      %p182 = scmp.eq.s32.totalorder %s21, 0
      %p183 = por %p181, %p182
      %p184 = scmp.ne.s32.totalorder %s173, %s176
      %p185 = scmp.eq.s32.totalorder %s26, 7
      %p186 = por %p184, %p185
      %p187 = scmp.ne.s32.totalorder %s176, %s177
      %p188 = scmp.eq.s32.totalorder %s26, 0
      %p189 = por %p187, %p188
      %p190 = scmp.ne.s32.totalorder %s176, %s177
      %p191 = scmp.eq.s32.totalorder %s27, 7
      %p192 = por %p190, %p191
      %p194 = scmp.ne.s32.totalorder %s177, %s193
      %p195 = scmp.eq.s32.totalorder %s27, 0
      %p196 = por %p194, %p195
      %s197 = ssub.s32 %s30, %s39
      %s198 = ssub.s32 %s28, %s47
      %s199 = sor.u32 %s197, %s198
      %s200 = ssub.s32 %s29, %s43
      %s201 = sor.u32 %s199, %s200
      %p202 = scmp.eq.s32.totalorder %s201, 0
      %s204 = sadd.s32 %s203, 1
      %s205 = scalar_select %p202, %s203, %s204
      %p208 = pneg %p202
      %p209 = scmp.eq.s32.totalorder %s21, 7
      %p210 = por %p208, %p209
      %p211 = scmp.ne.s32.totalorder %s203, %s206
      %p212 = scmp.eq.s32.totalorder %s21, 0
      %p213 = por %p211, %p212
      %p214 = scmp.ne.s32.totalorder %s203, %s206
      %p215 = scmp.eq.s32.totalorder %s26, 7
      %p216 = por %p214, %p215
      %p217 = scmp.ne.s32.totalorder %s206, %s207
      %p218 = scmp.eq.s32.totalorder %s26, 0
      %p219 = por %p217, %p218
      %p220 = scmp.ne.s32.totalorder %s206, %s207
      %p221 = scmp.eq.s32.totalorder %s27, 7
      %p222 = por %p220, %p221
      %p224 = scmp.ne.s32.totalorder %s207, %s223
      %p225 = scmp.eq.s32.totalorder %s27, 0
      %p226 = por %p224, %p225
      %s227 = ssub.s32 %s30, %s39
      %s228 = ssub.s32 %s28, %s47
      %s229 = sor.u32 %s227, %s228
      %s230 = ssub.s32 %s29, %s43
      %s231 = sor.u32 %s229, %s230
      %p232 = scmp.eq.s32.totalorder %s231, 0
      %s234 = sadd.s32 %s233, 1
      %s235 = scalar_select %p232, %s233, %s234
      %p238 = pneg %p232
      %p239 = scmp.eq.s32.totalorder %s21, 7
      %p240 = por %p238, %p239
      %p241 = scmp.ne.s32.totalorder %s233, %s236
      %p242 = scmp.eq.s32.totalorder %s21, 0
      %p243 = por %p241, %p242
      %p244 = scmp.ne.s32.totalorder %s233, %s236
      %p245 = scmp.eq.s32.totalorder %s26, 7
      %p246 = por %p244, %p245
      %p247 = scmp.ne.s32.totalorder %s236, %s237
      %p248 = scmp.eq.s32.totalorder %s26, 0
      %p249 = por %p247, %p248
      %p250 = scmp.ne.s32.totalorder %s236, %s237
      %p251 = scmp.eq.s32.totalorder %s27, 7
      %p252 = por %p250, %p251
      %p254 = scmp.ne.s32.totalorder %s237, %s253
      %p255 = scmp.eq.s32.totalorder %s27, 0
      %p256 = por %p254, %p255
      %s257 = ssub.s32 %s30, %s39
      %s258 = ssub.s32 %s28, %s47
      %s259 = sor.u32 %s257, %s258
      %s260 = ssub.s32 %s29, %s43
      %s261 = sor.u32 %s259, %s260
      %p262 = scmp.eq.s32.totalorder %s261, 0
      %s264 = sadd.s32 %s263, 1
      %s265 = scalar_select %p262, %s263, %s264
      %p268 = pneg %p262
      %p269 = scmp.eq.s32.totalorder %s21, 7
      %p270 = por %p268, %p269
      %p271 = scmp.ne.s32.totalorder %s263, %s266
      %p272 = scmp.eq.s32.totalorder %s21, 0
      %p273 = por %p271, %p272
      %p274 = scmp.ne.s32.totalorder %s263, %s266
      %p275 = scmp.eq.s32.totalorder %s26, 7
      %p276 = por %p274, %p275
      %p277 = scmp.ne.s32.totalorder %s266, %s267
      %p278 = scmp.eq.s32.totalorder %s26, 0
      %p279 = por %p277, %p278
      %p280 = scmp.ne.s32.totalorder %s266, %s267
      %p281 = scmp.eq.s32.totalorder %s27, 7
      %p282 = por %p280, %p281
      %p284 = scmp.ne.s32.totalorder %s267, %s283
      %p285 = scmp.eq.s32.totalorder %s27, 0
      %p286 = por %p284, %p285
      %p287 = scmp.le.s32.totalorder 1, %s21
      %p288 = scmp.lt.s32.totalorder %s21, 9
      %p289 = pnand %p287, %p288
      %p290 = pneg %p289
      // Predicated region
      $region9: #{tpu_custom_call.1} parent=5 // pred_check
        _
      $region10: #{tpu_custom_call.1} parent=5 // pred_check_branch
        %292 = sbr.rel (%p289) target = $region12
      $region11: #{tpu_custom_call.1} parent=5 // pred_region
        %s293 = ssub.s32 %s21, 1
        // Predicated region
        $region13: #{tpu_custom_call.1} parent=11 // pred_check
          %p294 = pneg %p89
        $region14: #{tpu_custom_call.1} parent=11 // pred_check_branch
          %296 = sbr.rel (%p294) target = $region16
        $region15: #{tpu_custom_call.1} parent=11 // pred_region
          _
        $region16: #{tpu_custom_call.1} parent=11 // pred_fallthru
          _
        // Predicated region
        $region17: #{tpu_custom_call.1} parent=11 // pred_check
          %p297 = pneg %p110
        $region18: #{tpu_custom_call.1} parent=11 // pred_check_branch
          %299 = sbr.rel (%p297) target = $region20
        $region19: #{tpu_custom_call.1} parent=11 // pred_region
          _
        $region20: #{tpu_custom_call.1} parent=11 // pred_fallthru
          _
        // Predicated region
        $region21: #{tpu_custom_call.1} parent=11 // pred_check
          %p300 = pneg %p131
        $region22: #{tpu_custom_call.1} parent=11 // pred_check_branch
          %302 = sbr.rel (%p300) target = $region24
        $region23: #{tpu_custom_call.1} parent=11 // pred_region
          _
        $region24: #{tpu_custom_call.1} parent=11 // pred_fallthru
          _
      $region12: #{tpu_custom_call.1} parent=5 // pred_fallthru
        _
      %p303 = scmp.lt.s32.totalorder %s21, 8
      // Predicated region
      $region25: #{tpu_custom_call.1} parent=5 // pred_check
        %p304 = pneg %p303
      $region26: #{tpu_custom_call.1} parent=5 // pred_check_branch
        %306 = sbr.rel (%p304) target = $region28
      $region27: #{tpu_custom_call.1} parent=5 // pred_region
        // Predicated region
        $region29: #{tpu_custom_call.1} parent=27 // pred_check
          %p307 = pneg %p62
        $region30: #{tpu_custom_call.1} parent=27 // pred_check_branch
          %309 = sbr.rel (%p307) target = $region32
        $region31: #{tpu_custom_call.1} parent=27 // pred_region
          %p310 = scmp.lt.s32.totalorder %s28, 1
          %s311 = scalar_select %p310, %s28, 1
          %p312 = scmp.lt.s32.totalorder %s29, 0
          %s313 = scalar_select %p312, %s29, 0
          %s314 = smul.addr %s311, 4
          %s315 = sadd.s32 %s313, %s314
          %s316 = smul.addr %s315, 8
          %s317 = scalar_lea.vmem %s0, %s316
        $region32: #{tpu_custom_call.1} parent=27 // pred_fallthru
          _
      $region28: #{tpu_custom_call.1} parent=5 // pred_fallthru
        _
      %p318 = scmp.le.s32.totalorder 1, %s21
      %p319 = scmp.lt.s32.totalorder %s21, 9
      %p320 = pnand %p318, %p319
      %p321 = pneg %p320
      // Predicated region
      $region33: #{tpu_custom_call.1} parent=5 // pred_check
        _
      $region34: #{tpu_custom_call.1} parent=5 // pred_check_branch
        %323 = sbr.rel (%p320) target = $region36
      $region35: #{tpu_custom_call.1} parent=5 // pred_region
        %s324 = ssub.s32 %s21, 1
        %p325 = scmp.lt.s32.totalorder %s31, 1
        %s326 = scalar_select %p325, %s31, 1
        %p327 = scmp.lt.s32.totalorder %s32, 0
        %s328 = scalar_select %p327, %s32, 0
        %s329 = smul.addr %s326, 4
        %s330 = sadd.s32 %s328, %s329
        %s331 = smul.addr %s330, 8
        %s332 = scalar_lea.vmem %s0, %s331
        %p333 = pneg %p68
        %p334 = pneg %p65
        %p335 = pneg %p89
        %p336 = pneg %p86
        %p337 = pneg %p110
        %p338 = pneg %p107
        %p339 = pneg %p131
        %p340 = pneg %p128
        %p341 = pneg %p159
        %p342 = pneg %p156
        %p343 = scmp.lt.s32.totalorder %s31, 1
        %s344 = scalar_select %p343, %s31, 1
        %p345 = scmp.lt.s32.totalorder %s32, 0
        %s346 = scalar_select %p345, %s32, 0
        %s347 = smul.addr %s344, 4
        %s348 = sadd.s32 %s346, %s347
        %s349 = smul.addr %s348, 8
        %s350 = scalar_lea.vmem %s4, %s349
        %p351 = pneg %p189
        %p352 = pneg %p186
        %s353 = sand.u32 %s176, 1
        %s354 = scalar_lea.sflag [#allocation4], %s353
        %s355 = sand.u32 %s176, 1
        %s356 = scalar_lea.vmem [#allocation3], %s355
        %p357 = pneg %p219
        %p358 = pneg %p216
        %s359 = sand.u32 %s26, 1
        %s360 = scalar_lea.sflag [#allocation6], %s359
        %s361 = sand.u32 %s206, 1
        %s362 = smul.addr %s361, 8
        %s363 = scalar_lea.vmem [#allocation5], %s362
        %p364 = pneg %p249
        %p365 = pneg %p246
        %p366 = scmp.lt.s32.totalorder %s33, 3
        %s367 = scalar_select %p366, %s33, 3
        %p368 = scmp.lt.s32.totalorder %s31, 1
        %s369 = scalar_select %p368, %s31, 1
        %p370 = scmp.lt.s32.totalorder %s32, 0
        %s371 = scalar_select %p370, %s32, 0
        %s372 = smul.addr %s369, 4
        %s373 = sadd.s32 %s371, %s372
        %s374 = smul.addr %s367, 8
        %s375 = sadd.s32 %s373, %s374
        %s376 = smul.addr %s375, 8
        %s377 = scalar_lea.vmem %s7, %s376
        %p378 = pneg %p279
        %p379 = pneg %p276
        %s380 = sand.u32 %s26, 1
        %s381 = scalar_lea.sflag [#allocation6], %s380
        %s382 = sand.u32 %s266, 1
        %s383 = scalar_lea.vmem [#allocation7], %s382
        %p384 = scmp.lt.s32.totalorder %s31, 1
        %s385 = scalar_select %p384, %s31, 1
        %p386 = scmp.lt.s32.totalorder %s32, 0
        %s387 = scalar_select %p386, %s32, 0
        %s388 = smul.addr %s385, 4
        %s389 = sadd.s32 %s387, %s388
        %s390 = smul.addr %s389, 8
        %s391 = scalar_lea.vmem %s0, %s390
        %p392 = scmp.lt.s32.totalorder %s31, 1
        %s393 = scalar_select %p392, %s31, 1
        %p394 = scmp.lt.s32.totalorder %s32, 0
        %s395 = scalar_select %p394, %s32, 0
        %s396 = smul.addr %s393, 4
        %s397 = sadd.s32 %s395, %s396
        %s398 = smul.addr %s397, 8
        %s399 = scalar_lea.vmem %s4, %s398
        %p400 = scmp.lt.s32.totalorder %s33, 3
        %s401 = scalar_select %p400, %s33, 3
        %p402 = scmp.lt.s32.totalorder %s31, 1
        %s403 = scalar_select %p402, %s31, 1
        %p404 = scmp.lt.s32.totalorder %s32, 0
        %s405 = scalar_select %p404, %s32, 0
        %s406 = smul.addr %s403, 4
        %s407 = sadd.s32 %s405, %s406
        %s408 = smul.addr %s401, 8
        %s409 = sadd.s32 %s407, %s408
        %s410 = smul.addr %s409, 8
        %s411 = scalar_lea.vmem %s7, %s410
        %p412 = scmp.eq.s32.totalorder %s33, 0
        // Predicated region
        $region37: #{tpu_custom_call.1} parent=35 // pred_check
          %p413 = pneg %p412
        $region38: #{tpu_custom_call.1} parent=35 // pred_check_branch
          %415 = sbr.rel (%p413) target = $region40
        $region39: #{tpu_custom_call.1} parent=35 // pred_region
          %v416 = vld [vmem:[%s391] sm:$0xff]
          %v417 = vld [vmem:[%s391 + $0x8] sm:$0xff]
          %v418 = vld [vmem:[%s391 + $0x10] sm:$0xff]
          %v419 = vld [vmem:[%s391 + $0x18] sm:$0xff]
          %420 = vxpose.xlu0.b32.start [1/16] %v416, 128
          %421 = vxpose.xlu0.b32.cont [2/16] %v417, 128
          %422 = vxpose.xlu0.b32.cont [3/16] %v418, 128
          %423 = vxpose.xlu0.b32.cont [4/16] %v419, 128
          %424 = vxpose.xlu0.b32.cont [5/16] 0.0, 128
          %425 = vxpose.xlu0.b32.cont [6/16] 0.0, 128
          %426 = vxpose.xlu0.b32.cont [7/16] 0.0, 128
          %427 = vxpose.xlu0.b32.cont [8/16] 0.0, 128
          %428 = vxpose.xlu0.b32.cont [9/16] 0.0, 128
          %429 = vxpose.xlu0.b32.cont [10/16] 0.0, 128
          %430 = vxpose.xlu0.b32.cont [11/16] 0.0, 128
          %431 = vxpose.xlu0.b32.cont [12/16] 0.0, 128
          %432 = vxpose.xlu0.b32.cont [13/16] 0.0, 128
          %433 = vxpose.xlu0.b32.cont [14/16] 0.0, 128
          %434 = vxpose.xlu0.b32.cont [15/16] 0.0, 128
          %435 = vxpose.xlu0.b32.end [16/16] 0.0, 128
          %v436 = vpop.trf.xlu0
          %v437 = vpop.trf.xlu0
          %v438 = vpop.trf.xlu0
          %v439 = vpop.trf.xlu0
          %v440 = vpop.trf.xlu0
          %v441 = vpop.trf.xlu0
          %v442 = vpop.trf.xlu0
          %v443 = vpop.trf.xlu0
          %v444 = vpop.trf.xlu0
          %v445 = vpop.trf.xlu0
          %v446 = vpop.trf.xlu0
          %v447 = vpop.trf.xlu0
          %v448 = vpop.trf.xlu0
          %v449 = vpop.trf.xlu0
          %v450 = vpop.trf.xlu0
          %v451 = vpop.trf.xlu0
          %vm452 = vcmask 261120
          %453 = vst.msk [vmem:[#allocation2] sm:$0xff] %vm452, %v436
        $region40: #{tpu_custom_call.1} parent=35 // pred_fallthru
          _
        %v454 = vld [vmem:[#allocation2] sm:$0xff]
        %s455 = smul.u32 %s33, 32
        %s456 = scalar_lea.vmem %s1, %s455
        %v457 = vld [vmem:[%s456] sm:$0xff]
        %v458 = vld [vmem:[%s456 + $0x8] sm:$0xff]
        %v459 = vld [vmem:[%s456 + $0x10] sm:$0xff]
        %v460 = vld [vmem:[%s456 + $0x18] sm:$0xff]
        %s461 = smul.u32 %s33, 128
        %s462 = scalar_lea.vmem %s2, %s461
        %v463 = vld [vmem:[%s462] sm:$0xff]
        %v464 = vld [vmem:[%s462 + $0x8] sm:$0xff]
        %v465 = vld [vmem:[%s462 + $0x10] sm:$0xff]
        %v466 = vld [vmem:[%s462 + $0x18] sm:$0xff]
        %v467 = vld [vmem:[%s462 + $0x20] sm:$0xff]
        %v468 = vld [vmem:[%s462 + $0x28] sm:$0xff]
        %v469 = vld [vmem:[%s462 + $0x30] sm:$0xff]
        %v470 = vld [vmem:[%s462 + $0x38] sm:$0xff]
        %v471 = vld [vmem:[%s462 + $0x40] sm:$0xff]
        %v472 = vld [vmem:[%s462 + $0x48] sm:$0xff]
        %v473 = vld [vmem:[%s462 + $0x50] sm:$0xff]
        %v474 = vld [vmem:[%s462 + $0x58] sm:$0xff]
        %v475 = vld [vmem:[%s462 + $0x60] sm:$0xff]
        %v476 = vld [vmem:[%s462 + $0x68] sm:$0xff]
        %v477 = vld [vmem:[%s462 + $0x70] sm:$0xff]
        %v478 = vld [vmem:[%s462 + $0x78] sm:$0xff]
        %s479 = scalar_lea.vmem %s3, %s33
        %v480 = vld [vmem:[%s479] sm:$0x1]
        %v481 = vmul.f32 %v454, %v454
        %vm482 = vcmask 261120
        %v483 = vsel %vm482, %v481, 0.0
        %484 = vadd.xlane.f32.xlu0 %v483
        %v485 = vpop.xlane.xlu0 %484
        %v487 = vsel %vm482, %v454, 0
        %489 = vmatpush.msra.mxu0 0.0
        %490 = vmatpush.msra.mxu0 0.0
        %491 = vmatpush.msra.mxu0 0.0
        %492 = vmatpush.msra.mxu0 0.0
        %493 = vmatpush.msra.mxu0 0.0
        %494 = vmatpush.msra.mxu0 0.0
        %495 = vmatpush.msra.mxu0 0.0
        %496 = vmatpush.msra.mxu0 0.0
        %497 = vmatpush.msra.mxu0 0.0
        %498 = vmatpush.msra.mxu0 0.0
        %499 = vmatpush.msra.mxu0 0.0
        %500 = vmatpush.msra.mxu0 0.0
        %501 = vmatpush.msra.mxu0 %v460
        %502 = vmatpush.msra.mxu0 %v459
        %503 = vmatpush.msra.mxu0 %v458
        %504 = vmatpush.msra.mxu0 %v457
        %505 = vmatmul.f32.gmra.mxu0 %v487
        %v506 = vpop.f32.mrf.mxu0
        %v507 = vadd.f32 0.0, %v506
        %508 = vdwg.mxu0
        %v509 = vsub.f32 %v507, %v485
        %v511 = vperm.slane %v480, 0
        %v513 = vsub.f32 %v509, %v511
        %514 = vmax.xlane.f32.xlu0 %v513
        %v515 = vpop.xlane.xlu0 %514
        %v516 = vlaneseq
        %v517 = vand.u32 %v516, 127
        %vm518 = vcmp.eq.f32.partialorder %v513, %v515
        %v519 = vsel %vm518, %v517, 128
        %v520 = vand.u32 %v519, 65535
        %v521 = vshra.s32 %v519, 16
        %v522 = vcvt.s32.f32 %v520
        %v523 = vcvt.s32.f32 %v521
        %524 = vmin.xlane.f32.xlu0 %v523
        %v525 = vpop.xlane.xlu0 %524
        %vm526 = vcmp.eq.f32.partialorder %v523, %v525
        %v527 = vsel %vm526, %v522, inf
        %528 = vmin.xlane.f32.xlu0 %v527
        %v529 = vpop.xlane.xlu0 %528
        %v530 = vcvt.f32.s32 %v529
        %v531 = vcvt.f32.s32 %v525
        %v532 = vshll.u32 %v531, 16
        %v533 = vadd.s32 %v532, %v530
        %vm534 = vcmp.eq.s32.totalorder %v517, %v533
        %v535 = vsel %vm534, 1, 0
        %v536 = vcvt.s32.f32 %v535
        %537 = vmatpush.msra.mxu0 %v478
        %538 = vmatpush.msra.mxu0 %v477
        %539 = vmatpush.msra.mxu0 %v476
        %540 = vmatpush.msra.mxu0 %v475
        %541 = vmatpush.msra.mxu0 %v474
        %542 = vmatpush.msra.mxu0 %v473
        %543 = vmatpush.msra.mxu0 %v472
        %544 = vmatpush.msra.mxu0 %v471
        %545 = vmatpush.msra.mxu0 %v470
        %546 = vmatpush.msra.mxu0 %v469
        %547 = vmatpush.msra.mxu0 %v468
        %548 = vmatpush.msra.mxu0 %v467
        %549 = vmatpush.msra.mxu0 %v466
        %550 = vmatpush.msra.mxu0 %v465
        %551 = vmatpush.msra.mxu0 %v464
        %552 = vmatpush.msra.mxu0 %v463
        %553 = vmatmul.f32.gmra.mxu0 %v536
        %v554 = vpop.f32.mrf.mxu0
        %v555 = vadd.f32 0.0, %v554
        %556 = vdwg.mxu0
        %v557 = vsub.f32 %v454, %v555
        %558 = vst.msk [vmem:[#allocation2] sm:$0xff] %vm482, %v557
        %v559 = vmul.f32 %v557, %v557
        %v560 = vsel %vm482, %v559, 0.0
        %561 = vadd.xlane.f32.xlu0 %v560
        %v562 = vpop.xlane.xlu0 %561
        %v564 = vperm.slane %v562, %v517
        %vm566 = vcmask 57344
        %567 = vst.msk [vmem:[%s383] sm:$0x1] %vm566, %v564
        %568 = vst [vmem:[%s363] sm:$0xff] %v513
        %v569 = vperm.slane %v533, %v517
        %570 = vst.msk [vmem:[%s356] sm:$0x1] %vm566, %v569
        %571 = vxpose.xlu0.b32.start [1/16] %v555, 128
        %572 = vxpose.xlu0.b32.cont [2/16] 0.0, 128
        %573 = vxpose.xlu0.b32.cont [3/16] 0.0, 128
        %574 = vxpose.xlu0.b32.cont [4/16] 0.0, 128
        %575 = vxpose.xlu0.b32.cont [5/16] 0.0, 128
        %576 = vxpose.xlu0.b32.cont [6/16] 0.0, 128
        %577 = vxpose.xlu0.b32.cont [7/16] 0.0, 128
        %578 = vxpose.xlu0.b32.cont [8/16] 0.0, 128
        %579 = vxpose.xlu0.b32.cont [9/16] 0.0, 128
        %580 = vxpose.xlu0.b32.cont [10/16] 0.0, 128
        %581 = vxpose.xlu0.b32.cont [11/16] 0.0, 128
        %582 = vxpose.xlu0.b32.cont [12/16] 0.0, 128
        %583 = vxpose.xlu0.b32.cont [13/16] 0.0, 128
        %584 = vxpose.xlu0.b32.cont [14/16] 0.0, 128
        %585 = vxpose.xlu0.b32.cont [15/16] 0.0, 128
        %586 = vxpose.xlu0.b32.end [16/16] 0.0, 128
        %v587 = vpop.trf.xlu0
        %v588 = vpop.trf.xlu0
        %v589 = vpop.trf.xlu0
        %v590 = vpop.trf.xlu0
        %v591 = vpop.trf.xlu0
        %v592 = vpop.trf.xlu0
        %v593 = vpop.trf.xlu0
        %v594 = vpop.trf.xlu0
        %v595 = vpop.trf.xlu0
        %v596 = vpop.trf.xlu0
        %v597 = vpop.trf.xlu0
        %v598 = vpop.trf.xlu0
        %v599 = vpop.trf.xlu0
        %v600 = vpop.trf.xlu0
        %v601 = vpop.trf.xlu0
        %v602 = vpop.trf.xlu0
        %vm603 = vcmask 64512
        %604 = vst.msk [vmem:[%s411] sm:$0xff] %vm603, %v587
        %605 = vst.msk [vmem:[%s411 + $0x8] sm:$0xff] %vm603, %v588
        %606 = vst.msk [vmem:[%s411 + $0x10] sm:$0xff] %vm603, %v589
        %607 = vst.msk [vmem:[%s411 + $0x18] sm:$0xff] %vm603, %v590
        // Predicated region
        $region41: #{tpu_custom_call.1} parent=35 // pred_check
          %p608 = pneg %p412
        $region42: #{tpu_custom_call.1} parent=35 // pred_check_branch
          %610 = sbr.rel (%p608) target = $region44
        $region43: #{tpu_custom_call.1} parent=35 // pred_region
          %611 = vst.msk [vmem:[%s399] sm:$0xff] %vm603, %v587
          %612 = vst.msk [vmem:[%s399 + $0x8] sm:$0xff] %vm603, %v588
          %613 = vst.msk [vmem:[%s399 + $0x10] sm:$0xff] %vm603, %v589
          %614 = vst.msk [vmem:[%s399 + $0x18] sm:$0xff] %vm603, %v590
        $region44: #{tpu_custom_call.1} parent=35 // pred_fallthru
          _
        %p615 = scmp.gt.s32.totalorder %s33, 0
        // Predicated region
        $region45: #{tpu_custom_call.1} parent=35 // pred_check
          %p616 = pneg %p615
        $region46: #{tpu_custom_call.1} parent=35 // pred_check_branch
          %618 = sbr.rel (%p616) target = $region48
        $region47: #{tpu_custom_call.1} parent=35 // pred_region
          %v619 = vld [vmem:[%s399] sm:$0xff]
          %v620 = vld [vmem:[%s399 + $0x8] sm:$0xff]
          %v621 = vld [vmem:[%s399 + $0x10] sm:$0xff]
          %v622 = vld [vmem:[%s399 + $0x18] sm:$0xff]
          %v623 = vadd.f32 %v619, %v587
          %v624 = vadd.f32 %v620, %v588
          %v625 = vadd.f32 %v621, %v589
          %v626 = vadd.f32 %v622, %v590
          %627 = vst.msk [vmem:[%s399] sm:$0xff] %vm603, %v623
          %628 = vst.msk [vmem:[%s399 + $0x8] sm:$0xff] %vm603, %v624
          %629 = vst.msk [vmem:[%s399 + $0x10] sm:$0xff] %vm603, %v625
          %630 = vst.msk [vmem:[%s399 + $0x18] sm:$0xff] %vm603, %v626
        $region48: #{tpu_custom_call.1} parent=35 // pred_fallthru
          _
        %p631 = scmp.lt.s32.totalorder %s31, 1
        %s632 = scalar_select %p631, %s31, 1
        %p633 = scmp.lt.s32.totalorder %s32, 0
        %s634 = scalar_select %p633, %s32, 0
        %s635 = smul.addr %s632, 4
        %s636 = sadd.s32 %s634, %s635
        %s637 = smul.addr %s636, 8
        %s638 = scalar_lea.vmem %s4, %s637
        %s639 = sand.u32 %s176, 1
        %s640 = scalar_lea.sflag [#allocation4], %s639
        %s641 = sand.u32 %s176, 1
        %s642 = scalar_lea.vmem [#allocation3], %s641
        %s643 = sand.u32 %s26, 1
        %s644 = scalar_lea.sflag [#allocation6], %s643
        %s645 = sand.u32 %s206, 1
        %s646 = smul.addr %s645, 8
        %s647 = scalar_lea.vmem [#allocation5], %s646
        %p648 = scmp.lt.s32.totalorder %s33, 3
        %s649 = scalar_select %p648, %s33, 3
        %p650 = scmp.lt.s32.totalorder %s31, 1
        %s651 = scalar_select %p650, %s31, 1
        %p652 = scmp.lt.s32.totalorder %s32, 0
        %s653 = scalar_select %p652, %s32, 0
        %s654 = smul.addr %s651, 4
        %s655 = sadd.s32 %s653, %s654
        %s656 = smul.addr %s649, 8
        %s657 = sadd.s32 %s655, %s656
        %s658 = smul.addr %s657, 8
        %s659 = scalar_lea.vmem %s7, %s658
        %s660 = sand.u32 %s26, 1
        %s661 = scalar_lea.sflag [#allocation6], %s660
        %s662 = sand.u32 %s266, 1
        %s663 = scalar_lea.vmem [#allocation7], %s662
        // Predicated region
        $region49: #{tpu_custom_call.1} parent=35 // pred_check
          %p664 = pneg %p156
        $region50: #{tpu_custom_call.1} parent=35 // pred_check_branch
          %666 = sbr.rel (%p664) target = $region52
        $region51: #{tpu_custom_call.1} parent=35 // pred_region
          _
        $region52: #{tpu_custom_call.1} parent=35 // pred_fallthru
          _
        // Predicated region
        $region53: #{tpu_custom_call.1} parent=35 // pred_check
          %p667 = pneg %p186
        $region54: #{tpu_custom_call.1} parent=35 // pred_check_branch
          %669 = sbr.rel (%p667) target = $region56
        $region55: #{tpu_custom_call.1} parent=35 // pred_region
          %671 = vsyncadd %s640, 0
          %s672 = sadd.s32 %s32, %s31
          %s673 = smul.addr %s33, 2
          %s674 = sadd.s32 %s672, %s673
          %s675 = scalar_lea.hbm %s5, %s674
          %s677 = sshll.u32 %s642, 4
          %s678 = int_to_ptr.vmem [resolvable:$true] %s677
          %s679 = sshll.u32 %s675, 4
          %s680 = int_to_ptr.hbm [resolvable:$true] %s679
          %682 = dma.vmem_to_hbm [thread:$0]  %s678, 16, %s680, %s640
        $region56: #{tpu_custom_call.1} parent=35 // pred_fallthru
          _
        // Predicated region
        $region57: #{tpu_custom_call.1} parent=35 // pred_check
          %p683 = pneg %p216
        $region58: #{tpu_custom_call.1} parent=35 // pred_check_branch
          %685 = sbr.rel (%p683) target = $region60
        $region59: #{tpu_custom_call.1} parent=35 // pred_region
          %687 = vsyncadd %s644, 0
          %s688 = sadd.s32 %s32, %s31
          %s689 = smul.addr %s33, 2
          %s690 = sadd.s32 %s688, %s689
          %s691 = smul.addr %s690, 8
          %s692 = scalar_lea.hbm %s6, %s691
          %s694 = sshll.u32 %s647, 4
          %s695 = int_to_ptr.vmem [resolvable:$true] %s694
          %s696 = sshll.u32 %s692, 4
          %s697 = int_to_ptr.hbm [resolvable:$true] %s696
          %699 = dma.vmem_to_hbm [thread:$0]  %s695, 128, %s697, %s644
        $region60: #{tpu_custom_call.1} parent=35 // pred_fallthru
          _
        // Predicated region
        $region61: #{tpu_custom_call.1} parent=35 // pred_check
          %p700 = pneg %p246
        $region62: #{tpu_custom_call.1} parent=35 // pred_check_branch
          %702 = sbr.rel (%p700) target = $region64
        $region63: #{tpu_custom_call.1} parent=35 // pred_region
          _
        $region64: #{tpu_custom_call.1} parent=35 // pred_fallthru
          _
        // Predicated region
        $region65: #{tpu_custom_call.1} parent=35 // pred_check
          %p703 = pneg %p276
        $region66: #{tpu_custom_call.1} parent=35 // pred_check_branch
          %705 = sbr.rel (%p703) target = $region68
        $region67: #{tpu_custom_call.1} parent=35 // pred_region
          %707 = vsyncadd %s661, 0
          %s708 = sadd.s32 %s32, %s31
          %s709 = smul.addr %s33, 2
          %s710 = sadd.s32 %s708, %s709
          %s711 = scalar_lea.hbm %s8, %s710
          %s713 = sshll.u32 %s663, 4
          %s714 = int_to_ptr.vmem [resolvable:$true] %s713
          %s715 = sshll.u32 %s711, 4
          %s716 = int_to_ptr.hbm [resolvable:$true] %s715
          %718 = dma.vmem_to_hbm [thread:$0]  %s714, 16, %s716, %s661
        $region68: #{tpu_custom_call.1} parent=35 // pred_fallthru
          _
      $region36: #{tpu_custom_call.1} parent=5 // pred_fallthru
        _
      %p719 = scmp.le.s32.totalorder 2, %s21
      // Predicated region
      $region69: #{tpu_custom_call.1} parent=5 // pred_check
        %p720 = pneg %p719
      $region70: #{tpu_custom_call.1} parent=5 // pred_check_branch
        %722 = sbr.rel (%p720) target = $region72
      $region71: #{tpu_custom_call.1} parent=5 // pred_region
        %s723 = ssub.s32 %s21, 2
        // Predicated region
        $region73: #{tpu_custom_call.1} parent=71 // pred_check
          %p724 = pneg %p162
        $region74: #{tpu_custom_call.1} parent=71 // pred_check_branch
          %726 = sbr.rel (%p724) target = $region76
        $region75: #{tpu_custom_call.1} parent=71 // pred_region
          %p727 = scmp.lt.s32.totalorder %s34, 1
          %s728 = scalar_select %p727, %s34, 1
          %p729 = scmp.lt.s32.totalorder %s35, 0
          %s730 = scalar_select %p729, %s35, 0
          %s731 = smul.addr %s728, 4
          %s732 = sadd.s32 %s730, %s731
          %s733 = smul.addr %s732, 8
          %s734 = scalar_lea.vmem %s4, %s733
        $region76: #{tpu_custom_call.1} parent=71 // pred_fallthru
          _
        // Predicated region
        $region77: #{tpu_custom_call.1} parent=71 // pred_check
          %p735 = pneg %p192
        $region78: #{tpu_custom_call.1} parent=71 // pred_check_branch
          %737 = sbr.rel (%p735) target = $region80
        $region79: #{tpu_custom_call.1} parent=71 // pred_region
          %s738 = sand.u32 %s177, 1
          %s739 = scalar_lea.sflag [#allocation4], %s738
          %s740 = sand.u32 %s177, 1
          %s741 = scalar_lea.vmem [#allocation3], %s740
          %743 = dma.done %s739, 16
        $region80: #{tpu_custom_call.1} parent=71 // pred_fallthru
          _
        // Predicated region
        $region81: #{tpu_custom_call.1} parent=71 // pred_check
          %p744 = pneg %p222
        $region82: #{tpu_custom_call.1} parent=71 // pred_check_branch
          %746 = sbr.rel (%p744) target = $region84
        $region83: #{tpu_custom_call.1} parent=71 // pred_region
          %s747 = sand.u32 %s27, 1
          %s748 = scalar_lea.sflag [#allocation6], %s747
          %s749 = sand.u32 %s207, 1
          %s750 = smul.addr %s749, 8
          %s751 = scalar_lea.vmem [#allocation5], %s750
          %753 = dma.done %s748, 128
        $region84: #{tpu_custom_call.1} parent=71 // pred_fallthru
          _
        // Predicated region
        $region85: #{tpu_custom_call.1} parent=71 // pred_check
          %p754 = pneg %p252
        $region86: #{tpu_custom_call.1} parent=71 // pred_check_branch
          %756 = sbr.rel (%p754) target = $region88
        $region87: #{tpu_custom_call.1} parent=71 // pred_region
          %p757 = scmp.lt.s32.totalorder %s36, 3
          %s758 = scalar_select %p757, %s36, 3
          %p759 = scmp.lt.s32.totalorder %s34, 1
          %s760 = scalar_select %p759, %s34, 1
          %p761 = scmp.lt.s32.totalorder %s35, 0
          %s762 = scalar_select %p761, %s35, 0
          %s763 = smul.addr %s760, 4
          %s764 = sadd.s32 %s762, %s763
          %s765 = smul.addr %s758, 8
          %s766 = sadd.s32 %s764, %s765
          %s767 = smul.addr %s766, 8
          %s768 = scalar_lea.vmem %s7, %s767
        $region88: #{tpu_custom_call.1} parent=71 // pred_fallthru
          _
        // Predicated region
        $region89: #{tpu_custom_call.1} parent=71 // pred_check
          %p769 = pneg %p282
        $region90: #{tpu_custom_call.1} parent=71 // pred_check_branch
          %771 = sbr.rel (%p769) target = $region92
        $region91: #{tpu_custom_call.1} parent=71 // pred_region
          %s772 = sand.u32 %s27, 1
          %s773 = scalar_lea.sflag [#allocation6], %s772
          %s774 = sand.u32 %s267, 1
          %s775 = scalar_lea.vmem [#allocation7], %s774
          %777 = dma.done %s773, 16
        $region92: #{tpu_custom_call.1} parent=71 // pred_fallthru
          _
      $region72: #{tpu_custom_call.1} parent=5 // pred_fallthru
        _
    $region6: #{tpu_custom_call.1} parent=1 // loop_footer
      %s25 = sadd.s32 1, %s21
    $region7: #{tpu_custom_call.1} parent=1 // loop_footer_branch
      %20 = sbr.rel target = $region3
    $region8: #{tpu_custom_call.1} parent=1 // loop_exit
      _
    %778 = vsyncpa [#allocation4], 1
    %s779 = scalar_lea.sflag [#allocation4], 1
    %780 = vsyncpa %s779, 1
    %781 = vsyncpa [#allocation6], 1
    %s782 = scalar_lea.sflag [#allocation6], 1
    %783 = vsyncpa %s782, 1

</llo_original>
